<compile_context>
chip_gen: v7x
topology: tpu7x:2x2x1
jax: 0.10.0
libtpu: 0.0.40
codegen_flags: <defaults>
</compile_context>

<pallas_src>
import functools

import jax
import jax.numpy as jnp
from jax.experimental import pallas as pl
from jax.experimental.pallas import tpu as pltpu


def _round_up(x, m):
    return -(-x // m) * m


def _largest_divisor_multiple(c, mult, cap):
    """Largest d with d | c, d % mult == 0 and d <= max(cap, mult); 0 if none."""
    best = 0
    d = mult
    limit = min(c, max(cap, mult))
    while d <= limit:
        if c % d == 0:
            best = d
        d += mult
    return best


def _vmem_limits():
    """Returns (double-buffered working-set budget, scoped vmem limit) in bytes."""
    cap = 64 * 1024 * 1024                      # conservative default (v7x VMEM)
    try:
        info = pltpu.get_tpu_info()
        cap = int(getattr(info, "vmem_capacity_bytes", cap)) or cap
    except Exception:
        pass
    limit = min(96 * 1024 * 1024, (cap * 3) // 4)   # headroom below physical VMEM
    return limit // 2, limit


def _connect2d_tiled_kernel(layers_ref, target_ref, out_ref, *, nc1, h, w, W, S,
                            pad_top, pad_left):
    # layers_ref: (1, tc, S)   flat-spatial encoder features (channels on sublanes)
    # target_ref: (1, tc, h*w) flat-spatial decoder features
    # out_ref:    (1, tc, S)   one output channel tile, flat-spatial
    # Grid = (N, nc1 + nc2): channel tiles [0, nc1) copy `layers`, the rest hold
    # the zero-padded `target_layers`.
    j = pl.program_id(1)
    dt = out_ref.dtype
    tc = out_ref.shape[1]

    @pl.when(j < nc1)
    def _copy_layers():
        # Lane/sublane-dense channel-tile memcpy.
        out_ref[...] = layers_ref[...].astype(dt)

    @pl.when(j >= nc1)
    def _pad_target():
        gap = W - w                     # pad_left + pad_right
        lo = pad_top * W                # flat start of the interior rows
        hi = (pad_top + h) * W          # flat end of the interior rows
        if gap == 0:
            # Common UNet case (diffX == 0): rows are already contiguous in the
            # flat layout -> one dense interior store + head/tail zero stores.
            if lo > 0:
                out_ref[0, :, 0:lo] = jnp.zeros((tc, lo), dt)
            out_ref[0, :, lo:hi] = target_ref[0, :, :].astype(dt)
            if S > hi:
                out_ref[0, :, hi:S] = jnp.zeros((tc, S - hi), dt)
        else:
            # Zero the whole tile once (dense vectorized store), then overlay
            # the h interior rows with static-slice stores.  Each row is read
            # from the ref inside the loop so live ranges stay bounded.
            out_ref[0, :, :] = jnp.zeros((tc, S), dt)
            for r in range(h):
                dst = (pad_top + r) * W + pad_left
                out_ref[0, :, dst:dst + w] = (
                    target_ref[0, :, r * w:(r + 1) * w].astype(dt))


def _connect2d_small_kernel(layers_ref, target_ref, out_ref, *, h, w, W, S,
                            pad_top, pad_left):
    # Fallback for channel counts that are not multiples of 8: one full-channel
    # block per batch element.  Everything is assembled in registers and stored
    # with a single aligned dense block store.
    dt = out_ref.dtype
    lay = layers_ref[0].astype(dt)                       # (c1, S)
    tgt = target_ref[0].astype(dt)                       # (c2, h*w)
    c2 = tgt.shape[0]
    gap = W - w
    lo, hi = pad_top * W, (pad_top + h) * W

    canvas = jnp.zeros((c2, S), dt)
    if gap == 0:
        canvas = canvas.at[:, lo:hi].set(tgt)
    else:
        for r in range(h):
            dst = (pad_top + r) * W + pad_left
            canvas = canvas.at[:, dst:dst + w].set(tgt[:, r * w:(r + 1) * w])

    out_ref[0] = jnp.concatenate([lay, canvas], axis=0)  # (C, S), aligned store


def connect2d(layers, target_layers):
    """Pallas equivalent of Connect2d.forward(layers, target_layers)."""
    N, c1, H, W = layers.shape
    N2, c2, h, w = target_layers.shape
    assert N == N2, "batch sizes must match"
    out_dtype = jnp.result_type(layers.dtype, target_layers.dtype)

    # F.pad semantics, including negative pads (= crop) when target is larger.
    diffY, diffX = H - h, W - w
    pT, pB = diffY // 2, diffY - diffY // 2
    pL, pR = diffX // 2, diffX - diffX // 2
    ct, cb = max(0, -pT), max(0, -pB)
    cl, cr = max(0, -pL), max(0, -pR)
    if ct or cb or cl or cr:
        target_layers = target_layers[:, :, ct:h - cb, cl:w - cr]
        h, w = target_layers.shape[2], target_layers.shape[3]
    pad_top, pad_left = max(0, pT), max(0, pL)

    S, hw, C = H * W, h * w, c1 + c2

    # Degenerate shapes (rare): plain XLA, keeps the kernels simple and correct.
    if N == 0 or S == 0 or c1 == 0 or c2 == 0 or h == 0 or w == 0:
        padded = jnp.zeros((N, c2, H, W), out_dtype)
        if c2 and h and w and S:
            padded = padded.at[:, :, pad_top:pad_top + h,
                               pad_left:pad_left + w].set(
                                   target_layers.astype(out_dtype))
        return jnp.concatenate([layers.astype(out_dtype), padded], axis=1)

    # Free contiguous reshapes: lane-dense flat-spatial views.
    layers_flat = layers.reshape(N, c1, S)
    target_flat = target_layers.reshape(N, c2, hw)

    ws_budget, vmem_limit = _vmem_limits()
    isz_l = jnp.dtype(layers.dtype).itemsize
    isz_t = jnp.dtype(target_layers.dtype).itemsize
    isz_o = jnp.dtype(out_dtype).itemsize
    per_ch = _round_up(S, 128) * (isz_l + isz_o) + _round_up(hw, 128) * isz_t
    tc_max = max(8, ws_budget // (2 * per_ch))           # 2 = double buffering

    # Channel tile: multiple of 8 (8*packing for narrow dtypes), divides c1,
    # fits the VMEM budget.  No gcd(c1, c2) constraint: the target/output halves
    # use partial final blocks.
    packing = max(1, 4 // isz_o)
    tc = _largest_divisor_multiple(c1, 8 * packing, tc_max)
    if not tc:
        tc = _largest_divisor_multiple(c1, 8, tc_max)

    cost = pl.CostEstimate(
        flops=0, transcendentals=0,
        bytes_accessed=int(layers.size * isz_l + target_layers.size * isz_t
                           + N * C * S * isz_o))

    if tc:
        # -------- main tiled path: channels packed into sublanes --------
        nc1 = c1 // tc
        if c2 < tc:
            # Keep the target channel block within the array extent (tiny
            # wrapper-side pad; only happens when c2 < tc).
            target_flat = jnp.pad(target_flat, ((0, 0), (0, tc - c2), (0, 0)))
            c2_eff = tc
        else:
            c2_eff = c2
        nc2 = -(-c2_eff // tc)

        kernel = functools.partial(
            _connect2d_tiled_kernel, nc1=nc1, h=h, w=w, W=W, S=S,
            pad_top=pad_top, pad_left=pad_left)

        out_flat = pl.pallas_call(
            kernel,
            out_shape=jax.ShapeDtypeStruct((N, C, S), out_dtype),
            grid=(N, nc1 + nc2),
            in_specs=[
                # Clamp: layers tile index frozen during target steps -> no refetch.
                pl.BlockSpec((1, tc, S),
                             lambda n, j: (n, jnp.minimum(j, nc1 - 1), 0)),
                # Clamp: target tile 0 is resident before the target steps begin.
                pl.BlockSpec((1, tc, hw),
                             lambda n, j: (n, jnp.maximum(j - nc1, 0), 0)),
            ],
            out_specs=pl.BlockSpec((1, tc, S), lambda n, j: (n, j, 0)),
            compiler_params=pltpu.CompilerParams(
                dimension_semantics=("parallel", "parallel"),
                vmem_limit_bytes=int(vmem_limit)),
            cost_estimate=cost,
        )(layers_flat, target_flat)
    else:
        # -------- fallback: channel counts not 8-aligned --------
        kernel = functools.partial(
            _connect2d_small_kernel, h=h, w=w, W=W, S=S,
            pad_top=pad_top, pad_left=pad_left)

        out_flat = pl.pallas_call(
            kernel,
            out_shape=jax.ShapeDtypeStruct((N, C, S), out_dtype),
            grid=(N,),
            in_specs=[
                pl.BlockSpec((1, c1, S), lambda n: (n, 0, 0)),
                pl.BlockSpec((1, c2, hw), lambda n: (n, 0, 0)),
            ],
            out_specs=pl.BlockSpec((1, C, S), lambda n: (n, 0, 0)),
            compiler_params=pltpu.CompilerParams(
                dimension_semantics=("parallel",),
                vmem_limit_bytes=int(vmem_limit)),
            cost_estimate=cost,
        )(layers_flat, target_flat)

    return out_flat.reshape(N, C, H, W)


def _reference(layers, target_layers):
    H, W = layers.shape[2], layers.shape[3]
    h, w = target_layers.shape[2], target_layers.shape[3]
    diffY, diffX = H - h, W - w
    padded = jnp.pad(
        target_layers,
        ((0, 0), (0, 0),
         (diffY // 2, diffY - diffY // 2),
         (diffX // 2, diffX - diffX // 2)))
    out_dtype = jnp.result_type(layers.dtype, target_layers.dtype)
    return jnp.concatenate([layers, padded], axis=1).astype(out_dtype)


if __name__ == "__main__":
    key = jax.random.PRNGKey(0)
    ks = jax.random.split(key, 6)

    cases = [
        # tiled path, horizontal+vertical pad, partial final target block
        ((2, 8, 16, 16), jnp.float32, (2, 12, 13, 14), jnp.float32),
        # tiled path, diffX == 0 fast path, bf16
        ((2, 16, 16, 16), jnp.bfloat16, (2, 16, 14, 16), jnp.bfloat16),
        # fallback path (c1 not a multiple of 8)
        ((2, 4, 16, 16), jnp.float32, (2, 6, 13, 14), jnp.float32),
    ]

    for i, (ls, ld, ts, td) in enumerate(cases):
        layers = jax.random.normal(ks[2 * i], ls).astype(ld)
        target = jax.random.normal(ks[2 * i + 1], ts).astype(td)

        out = jax.block_until_ready(connect2d(layers, target))
        ref = _reference(layers, target)

        assert out.shape == ref.shape, (i, out.shape, ref.shape)
        assert out.dtype == ref.dtype, (i, out.dtype, ref.dtype)
        assert jnp.array_equal(out, ref), f"case {i}: mismatch vs reference"

    print("KERNEL_OK")
</pallas_src>

<mosaic_0001>
module attributes {stable_mosaic.version = 11 : i64} {
  func.func @_connect2d_tiled_kernel(%arg0: i32, %arg1: i32, %arg2: memref<1x8x256xf32, #tpu.memory_space<vmem>>, %arg3: memref<1x8x182xf32, #tpu.memory_space<vmem>>, %arg4: memref<1x8x256xf32, #tpu.memory_space<vmem>>) attributes {dimension_semantics = [#tpu.dimension_semantics<parallel>, #tpu.dimension_semantics<parallel>], iteration_bounds = array<i64: 2, 3>, scalar_prefetch = 0 : i64, scratch_operands = 0 : i64, tpu.core_type = #tpu.core_type<tc>, window_params = [{transform_indices = @transform_0, window_bounds = array<i64: 1, 8, 256>}, {transform_indices = @transform_1, window_bounds = array<i64: 1, 8, 182>}, {transform_indices = @transform_2, window_bounds = array<i64: 1, 8, 256>}]} {
    %c1_i32 = arith.constant 1 : i32
    %0 = arith.cmpi slt, %arg1, %c1_i32 : i32
    %1 = arith.extui %0 : i1 to i32
    %c0_i32 = arith.constant 0 : i32
    %2 = arith.cmpi ne, %1, %c0_i32 : i32
    scf.if %2 {
      %c0 = arith.constant 0 : index
      %c0_2 = arith.constant 0 : index
      %c0_3 = arith.constant 0 : index
      %6 = vector.load %arg2[%c0, %c0_2, %c0_3] : memref<1x8x256xf32, #tpu.memory_space<vmem>>, vector<1x8x256xf32>
      %c0_4 = arith.constant 0 : index
      %c0_5 = arith.constant 0 : index
      %c0_6 = arith.constant 0 : index
      %7 = vector.load %arg4[%c0_4, %c0_5, %c0_6] : memref<1x8x256xf32, #tpu.memory_space<vmem>>, vector<1x8x256xf32>
      tpu.vector_store %arg4[%c0_4, %c0_5, %c0_6], %6 {strides = array<i32>} : memref<1x8x256xf32, #tpu.memory_space<vmem>>, vector<1x8x256xf32>,
    } else {
    }
    %c1_i32_0 = arith.constant 1 : i32
    %3 = arith.cmpi sge, %arg1, %c1_i32_0 : i32
    %4 = arith.extui %3 : i1 to i32
    %c0_i32_1 = arith.constant 0 : i32
    %5 = arith.cmpi ne, %4, %c0_i32_1 : i32
    scf.if %5 {
      %cst = arith.constant 0.000000e+00 : f32
      %6 = vector.broadcast %cst : f32 to vector<8x256xf32>
      %c0 = arith.constant 0 : index
      %c0_2 = arith.constant 0 : index
      %c0_3 = arith.constant 0 : index
      %7 = vector.load %arg4[%c0, %c0_2, %c0_3] : memref<1x8x256xf32, #tpu.memory_space<vmem>>, vector<1x8x256xf32>
      %8 = vector.shape_cast %7 : vector<1x8x256xf32> to vector<8x256xf32>
      %9 = vector.shape_cast %6 : vector<8x256xf32> to vector<1x8x256xf32>
      tpu.vector_store %arg4[%c0, %c0_2, %c0_3], %9 {strides = array<i32>} : memref<1x8x256xf32, #tpu.memory_space<vmem>>, vector<1x8x256xf32>,
      %c0_4 = arith.constant 0 : index
      %c0_5 = arith.constant 0 : index
      %c0_6 = arith.constant 0 : index
      %10 = vector.load %arg3[%c0_4, %c0_5, %c0_6] : memref<1x8x182xf32, #tpu.memory_space<vmem>>, vector<1x8x14xf32>
      %11 = vector.shape_cast %10 : vector<1x8x14xf32> to vector<8x14xf32>
      %c0_7 = arith.constant 0 : index
      %c0_8 = arith.constant 0 : index
      %c17 = arith.constant 17 : index
      %12 = vector.load %arg4[%c0_7, %c0_8, %c17] : memref<1x8x256xf32, #tpu.memory_space<vmem>>, vector<1x8x14xf32>
      %13 = vector.shape_cast %12 : vector<1x8x14xf32> to vector<8x14xf32>
      %14 = vector.shape_cast %11 : vector<8x14xf32> to vector<1x8x14xf32>
      tpu.vector_store %arg4[%c0_7, %c0_8, %c17], %14 {strides = array<i32>} : memref<1x8x256xf32, #tpu.memory_space<vmem>>, vector<1x8x14xf32>,
      %c0_9 = arith.constant 0 : index
      %c0_10 = arith.constant 0 : index
      %c14 = arith.constant 14 : index
      %15 = vector.load %arg3[%c0_9, %c0_10, %c14] : memref<1x8x182xf32, #tpu.memory_space<vmem>>, vector<1x8x14xf32>
      %16 = vector.shape_cast %15 : vector<1x8x14xf32> to vector<8x14xf32>
      %c0_11 = arith.constant 0 : index
      %c0_12 = arith.constant 0 : index
      %c33 = arith.constant 33 : index
      %17 = vector.load %arg4[%c0_11, %c0_12, %c33] : memref<1x8x256xf32, #tpu.memory_space<vmem>>, vector<1x8x14xf32>
      %18 = vector.shape_cast %17 : vector<1x8x14xf32> to vector<8x14xf32>
      %19 = vector.shape_cast %16 : vector<8x14xf32> to vector<1x8x14xf32>
      tpu.vector_store %arg4[%c0_11, %c0_12, %c33], %19 {strides = array<i32>} : memref<1x8x256xf32, #tpu.memory_space<vmem>>, vector<1x8x14xf32>,
      %c0_13 = arith.constant 0 : index
      %c0_14 = arith.constant 0 : index
      %c28 = arith.constant 28 : index
      %20 = vector.load %arg3[%c0_13, %c0_14, %c28] : memref<1x8x182xf32, #tpu.memory_space<vmem>>, vector<1x8x14xf32>
      %21 = vector.shape_cast %20 : vector<1x8x14xf32> to vector<8x14xf32>
      %c0_15 = arith.constant 0 : index
      %c0_16 = arith.constant 0 : index
      %c49 = arith.constant 49 : index
      %22 = vector.load %arg4[%c0_15, %c0_16, %c49] : memref<1x8x256xf32, #tpu.memory_space<vmem>>, vector<1x8x14xf32>
      %23 = vector.shape_cast %22 : vector<1x8x14xf32> to vector<8x14xf32>
      %24 = vector.shape_cast %21 : vector<8x14xf32> to vector<1x8x14xf32>
      tpu.vector_store %arg4[%c0_15, %c0_16, %c49], %24 {strides = array<i32>} : memref<1x8x256xf32, #tpu.memory_space<vmem>>, vector<1x8x14xf32>,
      %c0_17 = arith.constant 0 : index
      %c0_18 = arith.constant 0 : index
      %c42 = arith.constant 42 : index
      %25 = vector.load %arg3[%c0_17, %c0_18, %c42] : memref<1x8x182xf32, #tpu.memory_space<vmem>>, vector<1x8x14xf32>
      %26 = vector.shape_cast %25 : vector<1x8x14xf32> to vector<8x14xf32>
      %c0_19 = arith.constant 0 : index
      %c0_20 = arith.constant 0 : index
      %c65 = arith.constant 65 : index
      %27 = vector.load %arg4[%c0_19, %c0_20, %c65] : memref<1x8x256xf32, #tpu.memory_space<vmem>>, vector<1x8x14xf32>
      %28 = vector.shape_cast %27 : vector<1x8x14xf32> to vector<8x14xf32>
      %29 = vector.shape_cast %26 : vector<8x14xf32> to vector<1x8x14xf32>
      tpu.vector_store %arg4[%c0_19, %c0_20, %c65], %29 {strides = array<i32>} : memref<1x8x256xf32, #tpu.memory_space<vmem>>, vector<1x8x14xf32>,
      %c0_21 = arith.constant 0 : index
      %c0_22 = arith.constant 0 : index
      %c56 = arith.constant 56 : index
      %30 = vector.load %arg3[%c0_21, %c0_22, %c56] : memref<1x8x182xf32, #tpu.memory_space<vmem>>, vector<1x8x14xf32>
      %31 = vector.shape_cast %30 : vector<1x8x14xf32> to vector<8x14xf32>
      %c0_23 = arith.constant 0 : index
      %c0_24 = arith.constant 0 : index
      %c81 = arith.constant 81 : index
      %32 = vector.load %arg4[%c0_23, %c0_24, %c81] : memref<1x8x256xf32, #tpu.memory_space<vmem>>, vector<1x8x14xf32>
      %33 = vector.shape_cast %32 : vector<1x8x14xf32> to vector<8x14xf32>
      %34 = vector.shape_cast %31 : vector<8x14xf32> to vector<1x8x14xf32>
      tpu.vector_store %arg4[%c0_23, %c0_24, %c81], %34 {strides = array<i32>} : memref<1x8x256xf32, #tpu.memory_space<vmem>>, vector<1x8x14xf32>,
      %c0_25 = arith.constant 0 : index
      %c0_26 = arith.constant 0 : index
      %c70 = arith.constant 70 : index
      %35 = vector.load %arg3[%c0_25, %c0_26, %c70] : memref<1x8x182xf32, #tpu.memory_space<vmem>>, vector<1x8x14xf32>
      %36 = vector.shape_cast %35 : vector<1x8x14xf32> to vector<8x14xf32>
      %c0_27 = arith.constant 0 : index
      %c0_28 = arith.constant 0 : index
      %c97 = arith.constant 97 : index
      %37 = vector.load %arg4[%c0_27, %c0_28, %c97] : memref<1x8x256xf32, #tpu.memory_space<vmem>>, vector<1x8x14xf32>
      %38 = vector.shape_cast %37 : vector<1x8x14xf32> to vector<8x14xf32>
      %39 = vector.shape_cast %36 : vector<8x14xf32> to vector<1x8x14xf32>
      tpu.vector_store %arg4[%c0_27, %c0_28, %c97], %39 {strides = array<i32>} : memref<1x8x256xf32, #tpu.memory_space<vmem>>, vector<1x8x14xf32>,
      %c0_29 = arith.constant 0 : index
      %c0_30 = arith.constant 0 : index
      %c84 = arith.constant 84 : index
      %40 = vector.load %arg3[%c0_29, %c0_30, %c84] : memref<1x8x182xf32, #tpu.memory_space<vmem>>, vector<1x8x14xf32>
      %41 = vector.shape_cast %40 : vector<1x8x14xf32> to vector<8x14xf32>
      %c0_31 = arith.constant 0 : index
      %c0_32 = arith.constant 0 : index
      %c113 = arith.constant 113 : index
      %42 = vector.load %arg4[%c0_31, %c0_32, %c113] : memref<1x8x256xf32, #tpu.memory_space<vmem>>, vector<1x8x14xf32>
      %43 = vector.shape_cast %42 : vector<1x8x14xf32> to vector<8x14xf32>
      %44 = vector.shape_cast %41 : vector<8x14xf32> to vector<1x8x14xf32>
      tpu.vector_store %arg4[%c0_31, %c0_32, %c113], %44 {strides = array<i32>} : memref<1x8x256xf32, #tpu.memory_space<vmem>>, vector<1x8x14xf32>,
      %c0_33 = arith.constant 0 : index
      %c0_34 = arith.constant 0 : index
      %c98 = arith.constant 98 : index
      %45 = vector.load %arg3[%c0_33, %c0_34, %c98] : memref<1x8x182xf32, #tpu.memory_space<vmem>>, vector<1x8x14xf32>
      %46 = vector.shape_cast %45 : vector<1x8x14xf32> to vector<8x14xf32>
      %c0_35 = arith.constant 0 : index
      %c0_36 = arith.constant 0 : index
      %c129 = arith.constant 129 : index
      %47 = vector.load %arg4[%c0_35, %c0_36, %c129] : memref<1x8x256xf32, #tpu.memory_space<vmem>>, vector<1x8x14xf32>
      %48 = vector.shape_cast %47 : vector<1x8x14xf32> to vector<8x14xf32>
      %49 = vector.shape_cast %46 : vector<8x14xf32> to vector<1x8x14xf32>
      tpu.vector_store %arg4[%c0_35, %c0_36, %c129], %49 {strides = array<i32>} : memref<1x8x256xf32, #tpu.memory_space<vmem>>, vector<1x8x14xf32>,
      %c0_37 = arith.constant 0 : index
      %c0_38 = arith.constant 0 : index
      %c112 = arith.constant 112 : index
      %50 = vector.load %arg3[%c0_37, %c0_38, %c112] : memref<1x8x182xf32, #tpu.memory_space<vmem>>, vector<1x8x14xf32>
      %51 = vector.shape_cast %50 : vector<1x8x14xf32> to vector<8x14xf32>
      %c0_39 = arith.constant 0 : index
      %c0_40 = arith.constant 0 : index
      %c145 = arith.constant 145 : index
      %52 = vector.load %arg4[%c0_39, %c0_40, %c145] : memref<1x8x256xf32, #tpu.memory_space<vmem>>, vector<1x8x14xf32>
      %53 = vector.shape_cast %52 : vector<1x8x14xf32> to vector<8x14xf32>
      %54 = vector.shape_cast %51 : vector<8x14xf32> to vector<1x8x14xf32>
      tpu.vector_store %arg4[%c0_39, %c0_40, %c145], %54 {strides = array<i32>} : memref<1x8x256xf32, #tpu.memory_space<vmem>>, vector<1x8x14xf32>,
      %c0_41 = arith.constant 0 : index
      %c0_42 = arith.constant 0 : index
      %c126 = arith.constant 126 : index
      %55 = vector.load %arg3[%c0_41, %c0_42, %c126] : memref<1x8x182xf32, #tpu.memory_space<vmem>>, vector<1x8x14xf32>
      %56 = vector.shape_cast %55 : vector<1x8x14xf32> to vector<8x14xf32>
      %c0_43 = arith.constant 0 : index
      %c0_44 = arith.constant 0 : index
      %c161 = arith.constant 161 : index
      %57 = vector.load %arg4[%c0_43, %c0_44, %c161] : memref<1x8x256xf32, #tpu.memory_space<vmem>>, vector<1x8x14xf32>
      %58 = vector.shape_cast %57 : vector<1x8x14xf32> to vector<8x14xf32>
      %59 = vector.shape_cast %56 : vector<8x14xf32> to vector<1x8x14xf32>
      tpu.vector_store %arg4[%c0_43, %c0_44, %c161], %59 {strides = array<i32>} : memref<1x8x256xf32, #tpu.memory_space<vmem>>, vector<1x8x14xf32>,
      %c0_45 = arith.constant 0 : index
      %c0_46 = arith.constant 0 : index
      %c140 = arith.constant 140 : index
      %60 = vector.load %arg3[%c0_45, %c0_46, %c140] : memref<1x8x182xf32, #tpu.memory_space<vmem>>, vector<1x8x14xf32>
      %61 = vector.shape_cast %60 : vector<1x8x14xf32> to vector<8x14xf32>
      %c0_47 = arith.constant 0 : index
      %c0_48 = arith.constant 0 : index
      %c177 = arith.constant 177 : index
      %62 = vector.load %arg4[%c0_47, %c0_48, %c177] : memref<1x8x256xf32, #tpu.memory_space<vmem>>, vector<1x8x14xf32>
      %63 = vector.shape_cast %62 : vector<1x8x14xf32> to vector<8x14xf32>
      %64 = vector.shape_cast %61 : vector<8x14xf32> to vector<1x8x14xf32>
      tpu.vector_store %arg4[%c0_47, %c0_48, %c177], %64 {strides = array<i32>} : memref<1x8x256xf32, #tpu.memory_space<vmem>>, vector<1x8x14xf32>,
      %c0_49 = arith.constant 0 : index
      %c0_50 = arith.constant 0 : index
      %c154 = arith.constant 154 : index
      %65 = vector.load %arg3[%c0_49, %c0_50, %c154] : memref<1x8x182xf32, #tpu.memory_space<vmem>>, vector<1x8x14xf32>
      %66 = vector.shape_cast %65 : vector<1x8x14xf32> to vector<8x14xf32>
      %c0_51 = arith.constant 0 : index
      %c0_52 = arith.constant 0 : index
      %c193 = arith.constant 193 : index
      %67 = vector.load %arg4[%c0_51, %c0_52, %c193] : memref<1x8x256xf32, #tpu.memory_space<vmem>>, vector<1x8x14xf32>
      %68 = vector.shape_cast %67 : vector<1x8x14xf32> to vector<8x14xf32>
      %69 = vector.shape_cast %66 : vector<8x14xf32> to vector<1x8x14xf32>
      tpu.vector_store %arg4[%c0_51, %c0_52, %c193], %69 {strides = array<i32>} : memref<1x8x256xf32, #tpu.memory_space<vmem>>, vector<1x8x14xf32>,
      %c0_53 = arith.constant 0 : index
      %c0_54 = arith.constant 0 : index
      %c168 = arith.constant 168 : index
      %70 = vector.load %arg3[%c0_53, %c0_54, %c168] : memref<1x8x182xf32, #tpu.memory_space<vmem>>, vector<1x8x14xf32>
      %71 = vector.shape_cast %70 : vector<1x8x14xf32> to vector<8x14xf32>
      %c0_55 = arith.constant 0 : index
      %c0_56 = arith.constant 0 : index
      %c209 = arith.constant 209 : index
      %72 = vector.load %arg4[%c0_55, %c0_56, %c209] : memref<1x8x256xf32, #tpu.memory_space<vmem>>, vector<1x8x14xf32>
      %73 = vector.shape_cast %72 : vector<1x8x14xf32> to vector<8x14xf32>
      %74 = vector.shape_cast %71 : vector<8x14xf32> to vector<1x8x14xf32>
      tpu.vector_store %arg4[%c0_55, %c0_56, %c209], %74 {strides = array<i32>} : memref<1x8x256xf32, #tpu.memory_space<vmem>>, vector<1x8x14xf32>,
    } else {
    }
    return
  }
  func.func @transform_0(%arg0: i32, %arg1: i32) -> (i32, i32, i32) {
    %c0_i32 = arith.constant 0 : i32
    %0 = arith.minsi %arg1, %c0_i32 : i32
    %c0_i32_0 = arith.constant 0 : i32
    %c0_i32_1 = arith.constant 0 : i32
    return %arg0, %0, %c0_i32_0 : i32, i32, i32
  }
  func.func @transform_1(%arg0: i32, %arg1: i32) -> (i32, i32, i32) {
    %c1_i32 = arith.constant 1 : i32
    %0 = arith.subi %arg1, %c1_i32 : i32
    %c0_i32 = arith.constant 0 : i32
    %1 = arith.maxsi %0, %c0_i32 : i32
    %c0_i32_0 = arith.constant 0 : i32
    %c0_i32_1 = arith.constant 0 : i32
    return %arg0, %1, %c0_i32_0 : i32, i32, i32
  }
  func.func @transform_2(%arg0: i32, %arg1: i32) -> (i32, i32, i32) {
    %c0_i32 = arith.constant 0 : i32
    %c0_i32_0 = arith.constant 0 : i32
    return %arg0, %arg1, %c0_i32 : i32, i32, i32
  }
}

</mosaic_0001>

<llo_original>
// kernel: tpu_custom_call.1
$region0: #{tpu_custom_call.1}
  #allocation0 [shape = 'u32[]', space=smem, size = 0x4, offset = 0x4, fixed_abs, tag = 'smem constant byte address 0x4 - core index']
  #allocation1 [shape = 'u32[144,128]{1,0:T(1,128)}', space=vmem, size = 0x12000, scoped, tag = 'internal scratch']
  %s0 = inlined_call_operand.vmem [shape: f32[2,8,256], index: 0, kind: input, shape index: {}]
  %s1 = inlined_call_operand.vmem [shape: f32[2,12,182], index: 1, kind: input, shape index: {}]
  %s2 = inlined_call_operand.vmem [shape: f32[2,20,256], index: 2, kind: output, shape index: {}]
  %s3 = sld [smem:[#allocation0]]
  $region49: #{tpu_custom_call.1} parent=0
    _
  %s5 = ssub.s32 1, %s3
  %s6 = scalar_select 0, %s5, %s3
  loop: start=0, step=1, limit=8
  $region2: #{tpu_custom_call.1} parent=0 // loop_pre_header
    _
  $region3: #{tpu_custom_call.1} parent=0 // loop_header
    %s8 = sphi 0, %s12
    %p9 = scmp.ge.s32.totalorder %s8, 8
    %s15 = sphi 0, %s27
    %s16 = sphi 0, %s23
    %s17 = sphi 0, %s15
    %s18 = sphi 0, %s16
    %s19 = sphi 0, %s17
    %s20 = sphi 0, %s18
    %s36 = sphi 0, %s38
    %s39 = sphi 0, %s36
    %s40 = sphi 0, %s39
    %s56 = sphi 0, %s40
    %s70 = sphi 0, %s72
    %s73 = sphi 0, %s70
    %s74 = sphi 0, %s73
    %s90 = sphi 0, %s74
    %s98 = sphi 0, %s100
    %s101 = sphi 0, %s98
    %s102 = sphi 0, %s101
    %s118 = sphi 0, %s102
  $region4: #{tpu_custom_call.1} parent=0 // loop_header_branch
    %11 = sbr.rel (%p9) target = $region8
  $region5: #{tpu_custom_call.1} parent=0 // loop_body
    %s13 = ssub.s32 %s8, 1
    %s14 = ssub.s32 %s8, 2
    %s21 = sadd.s32 1, %s16
    %p22 = scmp.ge.s32.totalorder %s21, 3
    %s23 = scalar_select %p22, 0, %s21
    %s24 = sadd.s32 1, %s15
    %s25 = scalar_select %p22, %s24, %s15
    %p26 = scmp.ge.s32.totalorder %s25, 2
    %s27 = scalar_select %p26, 0, %s25
    %p28 = scmp.lt.s32.totalorder %s16, 0
    %s29 = scalar_select %p28, %s16, 0
    %p30 = scmp.lt.s32.totalorder %s23, 0
    %s31 = scalar_select %p30, %s23, 0
    %s32 = ssub.s32 %s15, %s27
    %s33 = ssub.s32 %s29, %s31
    %s34 = sor.u32 %s32, %s33
    %p35 = scmp.eq.s32.totalorder %s34, 0
    %s37 = sadd.s32 %s36, 1
    %s38 = scalar_select %p35, %s36, %s37
    %p41 = pneg %p35
    %p42 = scmp.eq.s32.totalorder %s8, 5
    %p43 = por %p41, %p42
    %p44 = scmp.ne.s32.totalorder %s36, %s39
    %p45 = scmp.eq.s32.totalorder %s8, 0
    %p46 = por %p44, %p45
    %p47 = scmp.ne.s32.totalorder %s36, %s39
    %p48 = scmp.eq.s32.totalorder %s13, 5
    %p49 = por %p47, %p48
    %p50 = scmp.ne.s32.totalorder %s39, %s40
    %p51 = scmp.eq.s32.totalorder %s13, 0
    %p52 = por %p50, %p51
    %p53 = scmp.ne.s32.totalorder %s39, %s40
    %p54 = scmp.eq.s32.totalorder %s14, 5
    %p55 = por %p53, %p54
    %p57 = scmp.ne.s32.totalorder %s40, %s56
    %p58 = scmp.eq.s32.totalorder %s14, 0
    %p59 = por %p57, %p58
    %s60 = ssub.s32 %s16, 1
    %p61 = scmp.gt.s32.totalorder %s60, 0
    %s62 = scalar_select %p61, %s60, 0
    %s63 = ssub.s32 %s23, 1
    %p64 = scmp.gt.s32.totalorder %s63, 0
    %s65 = scalar_select %p64, %s63, 0
    %s66 = ssub.s32 %s15, %s27
    %s67 = ssub.s32 %s62, %s65
    %s68 = sor.u32 %s66, %s67
    %p69 = scmp.eq.s32.totalorder %s68, 0
    %s71 = sadd.s32 %s70, 1
    %s72 = scalar_select %p69, %s70, %s71
    %p75 = pneg %p69
    %p76 = scmp.eq.s32.totalorder %s8, 5
    %p77 = por %p75, %p76
    %p78 = scmp.ne.s32.totalorder %s70, %s73
    %p79 = scmp.eq.s32.totalorder %s8, 0
    %p80 = por %p78, %p79
    %p81 = scmp.ne.s32.totalorder %s70, %s73
    %p82 = scmp.eq.s32.totalorder %s13, 5
    %p83 = por %p81, %p82
    %p84 = scmp.ne.s32.totalorder %s73, %s74
    %p85 = scmp.eq.s32.totalorder %s13, 0
    %p86 = por %p84, %p85
    %p87 = scmp.ne.s32.totalorder %s73, %s74
    %p88 = scmp.eq.s32.totalorder %s14, 5
    %p89 = por %p87, %p88
    %p91 = scmp.ne.s32.totalorder %s74, %s90
    %p92 = scmp.eq.s32.totalorder %s14, 0
    %p93 = por %p91, %p92
    %s94 = ssub.s32 %s15, %s27
    %s95 = ssub.s32 %s16, %s23
    %s96 = sor.u32 %s94, %s95
    %p97 = scmp.eq.s32.totalorder %s96, 0
    %s99 = sadd.s32 %s98, 1
    %s100 = scalar_select %p97, %s98, %s99
    %p103 = pneg %p97
    %p104 = scmp.eq.s32.totalorder %s8, 5
    %p105 = por %p103, %p104
    %p106 = scmp.ne.s32.totalorder %s98, %s101
    %p107 = scmp.eq.s32.totalorder %s8, 0
    %p108 = por %p106, %p107
    %p109 = scmp.ne.s32.totalorder %s98, %s101
    %p110 = scmp.eq.s32.totalorder %s13, 5
    %p111 = por %p109, %p110
    %p112 = scmp.ne.s32.totalorder %s101, %s102
    %p113 = scmp.eq.s32.totalorder %s13, 0
    %p114 = por %p112, %p113
    %p115 = scmp.ne.s32.totalorder %s101, %s102
    %p116 = scmp.eq.s32.totalorder %s14, 5
    %p117 = por %p115, %p116
    %p119 = scmp.ne.s32.totalorder %s102, %s118
    %p120 = scmp.eq.s32.totalorder %s14, 0
    %p121 = por %p119, %p120
    %p122 = scmp.le.s32.totalorder 1, %s8
    %p123 = scmp.lt.s32.totalorder %s8, 7
    %p124 = pnand %p122, %p123
    %p125 = pneg %p124
    // Predicated region
    $region9: #{tpu_custom_call.1} parent=5 // pred_check
      _
    $region10: #{tpu_custom_call.1} parent=5 // pred_check_branch
      %127 = sbr.rel (%p124) target = $region12
    $region11: #{tpu_custom_call.1} parent=5 // pred_region
      %s128 = ssub.s32 %s8, 1
    $region12: #{tpu_custom_call.1} parent=5 // pred_fallthru
      _
    %p129 = scmp.lt.s32.totalorder %s8, 6
    // Predicated region
    $region13: #{tpu_custom_call.1} parent=5 // pred_check
      %p130 = pneg %p129
    $region14: #{tpu_custom_call.1} parent=5 // pred_check_branch
      %132 = sbr.rel (%p130) target = $region16
    $region15: #{tpu_custom_call.1} parent=5 // pred_region
      // Predicated region
      $region17: #{tpu_custom_call.1} parent=15 // pred_check
        %p133 = pneg %p46
      $region18: #{tpu_custom_call.1} parent=15 // pred_check_branch
        %135 = sbr.rel (%p133) target = $region20
      $region19: #{tpu_custom_call.1} parent=15 // pred_region
        %p136 = scmp.lt.s32.totalorder %s16, 0
        %s137 = scalar_select %p136, %s16, 0
        %p138 = scmp.lt.s32.totalorder %s15, 1
        %s139 = scalar_select %p138, %s15, 1
        %p140 = scmp.lt.s32.totalorder %s137, 0
        %s141 = scalar_select %p140, %s137, 0
        %s142 = smul.addr %s141, 2
        %s143 = smul.addr %s139, 2
        %s144 = sadd.s32 %s142, %s143
        %s145 = smul.addr %s144, 8
        %s146 = scalar_lea.vmem %s0, %s145
        %p147 = scmp.lt.s32.totalorder %s16, 0
        %s148 = scalar_select %p147, %s16, 0
      $region20: #{tpu_custom_call.1} parent=15 // pred_fallthru
        _
      // Predicated region
      $region21: #{tpu_custom_call.1} parent=15 // pred_check
        %p149 = pneg %p80
      $region22: #{tpu_custom_call.1} parent=15 // pred_check_branch
        %151 = sbr.rel (%p149) target = $region24
      $region23: #{tpu_custom_call.1} parent=15 // pred_region
        %s152 = ssub.s32 %s16, 1
        %p153 = scmp.gt.s32.totalorder %s152, 0
        %s154 = scalar_select %p153, %s152, 0
        %p155 = scmp.lt.s32.totalorder %s15, 1
        %s156 = scalar_select %p155, %s15, 1
        %p157 = scmp.lt.s32.totalorder %s154, 1
        %s158 = scalar_select %p157, %s154, 1
        %s159 = smul.addr %s158, 2
        %s160 = smul.addr %s156, 4
        %s161 = sadd.s32 %s159, %s160
        %s162 = smul.addr %s161, 8
        %s163 = scalar_lea.vmem %s1, %s162
        %s164 = ssub.s32 %s16, 1
        %p165 = scmp.gt.s32.totalorder %s164, 0
        %s166 = scalar_select %p165, %s164, 0
      $region24: #{tpu_custom_call.1} parent=15 // pred_fallthru
        _
    $region16: #{tpu_custom_call.1} parent=5 // pred_fallthru
      _
    %p167 = scmp.le.s32.totalorder 1, %s8
    %p168 = scmp.lt.s32.totalorder %s8, 7
    %p169 = pnand %p167, %p168
    %p170 = pneg %p169
    // Predicated region
    $region25: #{tpu_custom_call.1} parent=5 // pred_check
      _
    $region26: #{tpu_custom_call.1} parent=5 // pred_check_branch
      %172 = sbr.rel (%p169) target = $region28
    $region27: #{tpu_custom_call.1} parent=5 // pred_region
      %s173 = ssub.s32 %s8, 1
      %p174 = scmp.lt.s32.totalorder %s18, 0
      %s175 = scalar_select %p174, %s18, 0
      %p176 = scmp.lt.s32.totalorder %s17, 1
      %s177 = scalar_select %p176, %s17, 1
      %p178 = scmp.lt.s32.totalorder %s175, 0
      %s179 = scalar_select %p178, %s175, 0
      %s180 = smul.addr %s179, 2
      %s181 = smul.addr %s177, 2
      %s182 = sadd.s32 %s180, %s181
      %s183 = smul.addr %s182, 8
      %s184 = scalar_lea.vmem %s0, %s183
      %p185 = pneg %p52
      %p186 = pneg %p49
      %s187 = ssub.s32 %s18, 1
      %p188 = scmp.gt.s32.totalorder %s187, 0
      %s189 = scalar_select %p188, %s187, 0
      %p190 = scmp.lt.s32.totalorder %s17, 1
      %s191 = scalar_select %p190, %s17, 1
      %p192 = scmp.lt.s32.totalorder %s189, 1
      %s193 = scalar_select %p192, %s189, 1
      %s194 = smul.addr %s193, 2
      %s195 = smul.addr %s191, 4
      %s196 = sadd.s32 %s194, %s195
      %s197 = smul.addr %s196, 8
      %s198 = scalar_lea.vmem %s1, %s197
      %p199 = pneg %p86
      %p200 = pneg %p83
      %p201 = pneg %p114
      %p202 = pneg %p111
      %p203 = scmp.lt.s32.totalorder %s17, 1
      %s204 = scalar_select %p203, %s17, 1
      %p205 = scmp.lt.s32.totalorder %s18, 2
      %s206 = scalar_select %p205, %s18, 2
      %s207 = smul.addr %s206, 2
      %s208 = smul.addr %s204, 6
      %s209 = sadd.s32 %s207, %s208
      %s210 = smul.addr %s209, 8
      %s211 = scalar_lea.vmem %s2, %s210
      %p212 = scmp.lt.s32.totalorder %s18, 0
      %s213 = scalar_select %p212, %s18, 0
      %p214 = scmp.lt.s32.totalorder %s17, 1
      %s215 = scalar_select %p214, %s17, 1
      %p216 = scmp.lt.s32.totalorder %s213, 0
      %s217 = scalar_select %p216, %s213, 0
      %s218 = smul.addr %s217, 2
      %s219 = smul.addr %s215, 2
      %s220 = sadd.s32 %s218, %s219
      %s221 = smul.addr %s220, 8
      %s222 = scalar_lea.vmem %s0, %s221
      %p223 = scmp.lt.s32.totalorder %s18, 0
      %s224 = scalar_select %p223, %s18, 0
      %s225 = ssub.s32 %s18, 1
      %p226 = scmp.gt.s32.totalorder %s225, 0
      %s227 = scalar_select %p226, %s225, 0
      %p228 = scmp.lt.s32.totalorder %s17, 1
      %s229 = scalar_select %p228, %s17, 1
      %p230 = scmp.lt.s32.totalorder %s227, 1
      %s231 = scalar_select %p230, %s227, 1
      %s232 = smul.addr %s231, 2
      %s233 = smul.addr %s229, 4
      %s234 = sadd.s32 %s232, %s233
      %s235 = smul.addr %s234, 8
      %s236 = scalar_lea.vmem %s1, %s235
      %s237 = ssub.s32 %s18, 1
      %p238 = scmp.gt.s32.totalorder %s237, 0
      %s239 = scalar_select %p238, %s237, 0
      %p240 = scmp.lt.s32.totalorder %s17, 1
      %s241 = scalar_select %p240, %s17, 1
      %p242 = scmp.lt.s32.totalorder %s18, 2
      %s243 = scalar_select %p242, %s18, 2
      %s244 = smul.addr %s243, 2
      %s245 = smul.addr %s241, 6
      %s246 = sadd.s32 %s244, %s245
      %s247 = smul.addr %s246, 8
      %s248 = scalar_lea.vmem %s2, %s247
      %p249 = scmp.lt.s32.totalorder %s18, 1
      // Predicated region
      $region29: #{tpu_custom_call.1} parent=27 // pred_check
        %p250 = pneg %p249
      $region30: #{tpu_custom_call.1} parent=27 // pred_check_branch
        %252 = sbr.rel (%p250) target = $region32
      $region31: #{tpu_custom_call.1} parent=27 // pred_region
        %v253 = vld [vmem:[%s222] sm:$0xff]
        %v254 = vld [vmem:[%s222 + $0x8] sm:$0xff]
        %255 = vst [vmem:[%s248] sm:$0xff] %v253
        %256 = vst [vmem:[%s248 + $0x8] sm:$0xff] %v254
      $region32: #{tpu_custom_call.1} parent=27 // pred_fallthru
        _
      %p257 = scmp.ge.s32.totalorder %s18, 1
      // Predicated region
      $region33: #{tpu_custom_call.1} parent=27 // pred_check
        %p258 = pneg %p257
      $region34: #{tpu_custom_call.1} parent=27 // pred_check_branch
        %260 = sbr.rel (%p258) target = $region36
      $region35: #{tpu_custom_call.1} parent=27 // pred_region
        %261 = vst [vmem:[%s248] sm:$0xff] 0.0
        %262 = vst [vmem:[%s248 + $0x8] sm:$0xff] 0.0
        %v263 = vld [vmem:[%s236] sm:$0xff]
        %265 = vrot.lane.b32.xlu0 %v263, 17
        %v266 = vpop.permute.xlu0 %265
        %vm268 = vcmask 253064
        %269 = vst.msk [vmem:[%s248] sm:$0xff] %vm268, %v266
        %v270 = vld [vmem:[%s236] sm:$0xff]
        %272 = vrot.lane.b32.xlu0 %v270, 19
        %v273 = vpop.permute.xlu0 %272
        %vm275 = vcmask 384264
        %276 = vst.msk [vmem:[%s248] sm:$0xff] %vm275, %v273
        %v277 = vld [vmem:[%s236] sm:$0xff]
        %279 = vrot.lane.b32.xlu0 %v277, 21
        %v280 = vpop.permute.xlu0 %279
        %vm282 = vcmask 515464
        %283 = vst.msk [vmem:[%s248] sm:$0xff] %vm282, %v280
        %v284 = vld [vmem:[%s236] sm:$0xff]
        %286 = vrot.lane.b32.xlu0 %v284, 23
        %v287 = vpop.permute.xlu0 %286
        %vm289 = vcmask 646664
        %290 = vst.msk [vmem:[%s248] sm:$0xff] %vm289, %v287
        %v291 = vld [vmem:[%s236] sm:$0xff]
        %293 = vrot.lane.b32.xlu0 %v291, 25
        %v294 = vpop.permute.xlu0 %293
        %vm296 = vcmask 777864
        %297 = vst.msk [vmem:[%s248] sm:$0xff] %vm296, %v294
        %v298 = vld [vmem:[%s236] sm:$0xff]
        %300 = vrot.lane.b32.xlu0 %v298, 27
        %v301 = vpop.permute.xlu0 %300
        %vm303 = vcmask 909064
        %304 = vst.msk [vmem:[%s248] sm:$0xff] %vm303, %v301
        %v305 = vld [vmem:[%s236] sm:$0xff]
        %307 = vrot.lane.b32.xlu0 %v305, 29
        %v308 = vpop.permute.xlu0 %307
        %vm310 = vcmask 1040264
        %311 = vst.msk [vmem:[%s248] sm:$0xff] %vm310, %v308
        %v312 = vld [vmem:[%s236] sm:$0xff]
        %314 = vrot.lane.b32.xlu0 %v312, 31
        %v315 = vpop.permute.xlu0 %314
        %vm317 = vcmask 121864
        %318 = vst.msk [vmem:[%s248 + $0x8] sm:$0xff] %vm317, %v315
        %v319 = vld [vmem:[%s236] sm:$0xff]
        %321 = vrot.lane.b32.xlu0 %v319, 33
        %v322 = vpop.permute.xlu0 %321
        %324 = vst.msk [vmem:[%s248 + $0x8] sm:$0xff] %vm268, %v322
        %v325 = vld [vmem:[%s236] sm:$0xff]
        %v326 = vld [vmem:[%s236 + $0x8] sm:$0xff]
        %329 = vrot.lane.b32.xlu0 %v325, 35
        %v330 = vpop.permute.xlu0 %329
        %331 = vrot.lane.b32.xlu0 %v326, 35
        %v332 = vpop.permute.xlu0 %331
        %vm333 = vcmask 285696
        %v334 = vsel %vm333, %v330, %v332
        %336 = vst.msk [vmem:[%s248 + $0x8] sm:$0xff] %vm275, %v334
        %v337 = vld [vmem:[%s236 + $0x8] sm:$0xff]
        %339 = vrot.lane.b32.xlu0 %v337, 37
        %v340 = vpop.permute.xlu0 %339
        %342 = vst.msk [vmem:[%s248 + $0x8] sm:$0xff] %vm282, %v340
        %v343 = vld [vmem:[%s236 + $0x8] sm:$0xff]
        %345 = vrot.lane.b32.xlu0 %v343, 39
        %v346 = vpop.permute.xlu0 %345
        %348 = vst.msk [vmem:[%s248 + $0x8] sm:$0xff] %vm289, %v346
        %v349 = vld [vmem:[%s236 + $0x8] sm:$0xff]
        %351 = vrot.lane.b32.xlu0 %v349, 41
        %v352 = vpop.permute.xlu0 %351
        %354 = vst.msk [vmem:[%s248 + $0x8] sm:$0xff] %vm296, %v352
      $region36: #{tpu_custom_call.1} parent=27 // pred_fallthru
        _
      %p355 = scmp.lt.s32.totalorder %s17, 1
      %s356 = scalar_select %p355, %s17, 1
      %p357 = scmp.lt.s32.totalorder %s18, 2
      %s358 = scalar_select %p357, %s18, 2
      %s359 = smul.addr %s358, 2
      %s360 = smul.addr %s356, 6
      %s361 = sadd.s32 %s359, %s360
      %s362 = smul.addr %s361, 8
      %s363 = scalar_lea.vmem %s2, %s362
      // Predicated region
      $region37: #{tpu_custom_call.1} parent=27 // pred_check
        %p364 = pneg %p111
      $region38: #{tpu_custom_call.1} parent=27 // pred_check_branch
        %366 = sbr.rel (%p364) target = $region40
      $region39: #{tpu_custom_call.1} parent=27 // pred_region
        _
      $region40: #{tpu_custom_call.1} parent=27 // pred_fallthru
        _
    $region28: #{tpu_custom_call.1} parent=5 // pred_fallthru
      _
    %p367 = scmp.le.s32.totalorder 2, %s8
    // Predicated region
    $region41: #{tpu_custom_call.1} parent=5 // pred_check
      %p368 = pneg %p367
    $region42: #{tpu_custom_call.1} parent=5 // pred_check_branch
      %370 = sbr.rel (%p368) target = $region44
    $region43: #{tpu_custom_call.1} parent=5 // pred_region
      %s371 = ssub.s32 %s8, 2
      // Predicated region
      $region45: #{tpu_custom_call.1} parent=43 // pred_check
        %p372 = pneg %p117
      $region46: #{tpu_custom_call.1} parent=43 // pred_check_branch
        %374 = sbr.rel (%p372) target = $region48
      $region47: #{tpu_custom_call.1} parent=43 // pred_region
        %p375 = scmp.lt.s32.totalorder %s19, 1
        %s376 = scalar_select %p375, %s19, 1
        %p377 = scmp.lt.s32.totalorder %s20, 2
        %s378 = scalar_select %p377, %s20, 2
        %s379 = smul.addr %s378, 2
        %s380 = smul.addr %s376, 6
        %s381 = sadd.s32 %s379, %s380
        %s382 = smul.addr %s381, 8
        %s383 = scalar_lea.vmem %s2, %s382
      $region48: #{tpu_custom_call.1} parent=43 // pred_fallthru
        _
    $region44: #{tpu_custom_call.1} parent=5 // pred_fallthru
      _
  $region6: #{tpu_custom_call.1} parent=0 // loop_footer
    %s12 = sadd.s32 1, %s8
  $region7: #{tpu_custom_call.1} parent=0 // loop_footer_branch
    %7 = sbr.rel target = $region3
  $region8: #{tpu_custom_call.1} parent=0 // loop_exit
    _

</llo_original>
